<compile_context>
chip_gen: v7x
topology: tpu7x:2x2x1
jax: 0.10.0
libtpu: 0.0.40
codegen_flags: <defaults>
</compile_context>

<pallas_src>
import functools

import jax
import jax.numpy as jnp
import numpy as np
from jax.experimental import pallas as pl
from jax.experimental.pallas import tpu as pltpu


def _lstr_seg_loss_kernel(labels_ref, logits_ref, out_ref, *, ignore_index,
                          num_classes):
    """One (stage p, time-tile t) grid step.

    labels_ref: (B, tT)    int32
    logits_ref: (B, C, tT) native dtype (stage dim squeezed by BlockSpec)
    out_ref:    (1, 1, B, 1) float32  per-(stage, tile, batch) partial sum
    """
    logits = logits_ref[...]                      # (B, C, tT), native dtype
    labels = labels_ref[...]                      # (B, tT) int32
    B, C, Tt = logits.shape

    valid = labels != ignore_index                # (B, tT) bool

    # Stable log-sum-exp over the class (sublane) axis.  Max/subtract stay in
    # the input dtype (cheap on v6e/v7x bf16 VALU); exp/log/sum run in f32.
    m = jnp.max(logits, axis=1, keepdims=True)                     # (B, 1, tT)
    shifted = (logits - m).astype(jnp.float32)                     # (B, C, tT)
    lse = m[:, 0, :].astype(jnp.float32) + jnp.log(
        jnp.sum(jnp.exp(shifted), axis=1))                         # (B, tT)

    # Logit at the (refined) label.  Invalid labels are mapped out of [0, C)
    # so the compare never matches -> picked == 0 there, with no extra
    # (B, C, tT) mask op.  No full log-prob tensor is ever materialized.
    refine = jnp.where(valid, labels, num_classes)                 # (B, tT)
    cls_iota = jax.lax.broadcasted_iota(jnp.int32, (B, C, Tt), 1)
    sel = cls_iota == refine[:, None, :]                           # (B, C, tT)
    picked = jnp.sum(jnp.where(sel, logits, 0.0),
                     axis=1).astype(jnp.float32)                   # (B, tT)

    # -log_softmax(logits)[label], masked by validity.
    seg = jnp.where(valid, lse - picked, 0.0)                      # (B, tT)

    per_b = jnp.sum(seg, axis=1, keepdims=True)                    # (B, 1)
    out_ref[...] = per_b.reshape(out_ref.shape)


def _vmem_limit_bytes():
    """Generation-aware scoped-VMEM limit for this kernel."""
    cap = None
    try:
        info = pltpu.get_tpu_info()
        cap = getattr(info, "vmem_capacity_bytes", None)
    except Exception:
        cap = None
    if cap is None:
        cap = 128 * 1024 * 1024
    if cap <= 64 * 1024 * 1024:          # v7x-class TensorCore: 64 MiB physical
        return 48 * 1024 * 1024
    return 64 * 1024 * 1024              # v5e / v6e: 128 MiB physical


def _choose_time_tile(T, B, C, itemsize, vmem_limit_bytes):
    """Pick (t_tile, T_pad) for the time (lane) axis.

    Live-footprint model per time column: the logits block is double-buffered
    in its native dtype, and the kernel materializes ~4 f32-sized (B, C)
    temporaries (shifted, exp, iota/onehot, select) before they reduce, so the
    effective footprint is well above the raw block — this matters most on
    v7x's 64 MiB VMEM.
    """
    per_t = max(1, B * C * (2 * itemsize + 4 * 4))
    budget = int(vmem_limit_bytes * 0.6)
    max_t = max(budget // per_t, 1)

    if T % 128 != 0 and T <= max_t:
        # Small / non-aligned: a full-T block is always legal and cheapest.
        return T, T

    # Pad up to a multiple of 128 (tail labels get ignore_index -> zero loss).
    T_pad = T if T % 128 == 0 else ((T + 127) // 128) * 128
    if T_pad <= max_t:
        return T_pad, T_pad

    best = 128
    cand = 128
    limit = max((max_t // 128) * 128, 128)
    while cand <= limit:
        if T_pad % cand == 0:
            best = cand
        cand += 128
    return best, T_pad


def lstr_segmentation_loss(head_score, labels, precise_sliding_num, *,
                           num_classes, loss_weight=1.0, ignore_index=-100,
                           eps=1e-10):
    """head_score: (P, B, C, T); labels: (B, L) int with L >= T;
    precise_sliding_num: (B,) float. Returns {'loss': scalar}."""
    P, B, C, T = head_score.shape
    assert C == num_classes

    labels_t = labels[:, -T:].astype(jnp.int32)

    # NOTE: PyTorch hard-codes `labels != -100` over the FULL labels tensor for
    # the denominator (independent of self.ignore_index); mirrored exactly.
    denom = jnp.sum(labels != -100).astype(jnp.float32) + eps
    weight = (1.0 / (precise_sliding_num.astype(jnp.float32) + eps)) / denom  # (B,)

    vmem_limit = _vmem_limit_bytes()
    itemsize = jnp.dtype(head_score.dtype).itemsize
    t_tile, T_pad = _choose_time_tile(T, B, C, itemsize, vmem_limit)

    if T_pad != T:
        pad = T_pad - T
        head_score = jnp.pad(head_score, ((0, 0), (0, 0), (0, 0), (0, pad)))
        labels_t = jnp.pad(labels_t, ((0, 0), (0, pad)),
                           constant_values=ignore_index)
    n_t = T_pad // t_tile

    kernel = functools.partial(_lstr_seg_loss_kernel,
                               ignore_index=ignore_index,
                               num_classes=num_classes)

    partial = pl.pallas_call(
        kernel,
        out_shape=jax.ShapeDtypeStruct((P, n_t, B, 1), jnp.float32),
        grid=(P, n_t),
        in_specs=[
            pl.BlockSpec((B, t_tile), lambda p, t: (0, t)),            # labels
            pl.BlockSpec((None, B, C, t_tile),
                         lambda p, t: (p, 0, 0, t)),                   # logits (stage squeezed)
        ],
        out_specs=pl.BlockSpec((1, 1, B, 1), lambda p, t: (p, t, 0, 0)),
        compiler_params=pltpu.CompilerParams(
            dimension_semantics=("parallel", "parallel"),
            vmem_limit_bytes=vmem_limit),
    )(labels_t, head_score)

    per_b = jnp.sum(partial[:, :, :, 0], axis=(0, 1))                  # (B,)
    loss = jnp.sum(per_b * weight) * loss_weight
    return {"loss": loss}


def _reference_loss(head_score, labels, precise_sliding_num, *, num_classes,
                    loss_weight=1.0, ignore_index=-100, eps=1e-10):
    """Pure-JAX reference mirroring the PyTorch forward exactly."""
    P, B, C, T = head_score.shape
    raw = labels[:, -T:]
    refine = jnp.where(raw != ignore_index, raw, 0)
    ce_y = jax.nn.one_hot(refine, num_classes, dtype=jnp.float32)
    ce_y = jnp.where((raw != ignore_index)[..., None], ce_y, 0.0)
    denom = jnp.sum(labels != -100).astype(jnp.float32) + eps
    total = 0.0
    for p in range(P):
        logp = jax.nn.log_softmax(
            jnp.transpose(head_score[p].astype(jnp.float32), (0, 2, 1)), axis=-1)
        seg = jnp.sum(-ce_y * logp, axis=-1)                  # (B, T)
        total += jnp.sum(
            jnp.sum(seg, axis=-1) /
            (precise_sliding_num.astype(jnp.float32) + eps)) / denom
    return total * loss_weight


if __name__ == "__main__":
    key = jax.random.PRNGKey(0)
    k1, k2, k3 = jax.random.split(key, 3)

    P, B, C, T, L = 3, 2, 11, 8, 12   # stages, batch, classes, time, label len
    num_classes = C
    ignore_index = -100

    head_score = jax.random.normal(k1, (P, B, C, T), dtype=jnp.float32)
    labels = jax.random.randint(k2, (B, L), 0, num_classes, dtype=jnp.int32)
    # sprinkle some ignore_index entries to exercise the masking path
    labels = labels.at[0, -2:].set(ignore_index)
    labels = labels.at[1, 3].set(ignore_index)
    precise_sliding_num = jax.random.uniform(
        k3, (B,), minval=1.0, maxval=4.0, dtype=jnp.float32)

    out = lstr_segmentation_loss(
        head_score, labels, precise_sliding_num,
        num_classes=num_classes, loss_weight=1.0, ignore_index=ignore_index)
    loss = jax.block_until_ready(out["loss"])

    ref = jax.block_until_ready(_reference_loss(
        head_score, labels, precise_sliding_num,
        num_classes=num_classes, loss_weight=1.0, ignore_index=ignore_index))

    np.testing.assert_allclose(np.asarray(loss), np.asarray(ref),
                               rtol=1e-5, atol=1e-6)
    print("KERNEL_OK")
</pallas_src>

<mosaic_0001>
module attributes {stable_mosaic.version = 11 : i64} {
  func.func @_lstr_seg_loss_kernel(%arg0: i32, %arg1: i32, %arg2: memref<2x8xi32, #tpu.memory_space<vmem>>, %arg3: memref<1x2x11x8xf32, #tpu.memory_space<vmem>>, %arg4: memref<1x1x2x1xf32, #tpu.memory_space<vmem>>) attributes {dimension_semantics = [#tpu.dimension_semantics<parallel>, #tpu.dimension_semantics<parallel>], iteration_bounds = array<i64: 3, 1>, scalar_prefetch = 0 : i64, scratch_operands = 0 : i64, tpu.core_type = #tpu.core_type<tc>, window_params = [{transform_indices = @transform_0, window_bounds = array<i64: 2, 8>}, {transform_indices = @transform_1, window_bounds = array<i64: 1, 2, 11, 8>}, {transform_indices = @transform_2, window_bounds = array<i64: 1, 1, 2, 1>}]} {
    %c0 = arith.constant 0 : index
    %c0_0 = arith.constant 0 : index
    %c0_1 = arith.constant 0 : index
    %c0_2 = arith.constant 0 : index
    %0 = vector.load %arg3[%c0, %c0_0, %c0_1, %c0_2] : memref<1x2x11x8xf32, #tpu.memory_space<vmem>>, vector<1x2x11x8xf32>
    %1 = vector.shape_cast %0 : vector<1x2x11x8xf32> to vector<2x11x8xf32>
    %c0_3 = arith.constant 0 : index
    %c0_4 = arith.constant 0 : index
    %2 = vector.load %arg2[%c0_3, %c0_4] : memref<2x8xi32, #tpu.memory_space<vmem>>, vector<2x8xi32>
    %c-100_i32 = arith.constant -100 : i32
    %3 = vector.broadcast %c-100_i32 : i32 to vector<2x8xi32>
    %4 = arith.cmpi ne, %2, %3 : vector<2x8xi32>
    %cst = arith.constant dense<0xFF800000> : vector<2x8xf32>
    %5 = vector.multi_reduction <maximumf>, %1, %cst [1] : vector<2x11x8xf32> to vector<2x8xf32>
    %6 = vector.shape_cast %5 : vector<2x8xf32> to vector<2x1x8xf32>
    %7 = vector.broadcast %6 : vector<2x1x8xf32> to vector<2x11x8xf32>
    %8 = arith.subf %1, %7 : vector<2x11x8xf32>
    %9 = vector.shape_cast %6 : vector<2x1x8xf32> to vector<2x8xf32>
    %10 = math.exp %8 : vector<2x11x8xf32>
    %cst_5 = arith.constant dense<0.000000e+00> : vector<2x8xf32>
    %11 = vector.multi_reduction <add>, %10, %cst_5 [1] : vector<2x11x8xf32> to vector<2x8xf32>
    %12 = math.log %11 : vector<2x8xf32>
    %13 = arith.addf %9, %12 : vector<2x8xf32>
    %c11_i32 = arith.constant 11 : i32
    %14 = vector.broadcast %c11_i32 : i32 to vector<2x8xi32>
    %15 = arith.select %4, %2, %14 : vector<2x8xi1>, vector<2x8xi32>
    %16 = tpu.iota {dimensions = array<i32: 1>} : vector<2x11x8xi32>
    %17 = vector.shape_cast %15 : vector<2x8xi32> to vector<2x1x8xi32>
    %18 = vector.broadcast %17 : vector<2x1x8xi32> to vector<2x11x8xi32>
    %19 = arith.cmpi eq, %16, %18 : vector<2x11x8xi32>
    %cst_6 = arith.constant 0.000000e+00 : f32
    %20 = vector.broadcast %cst_6 : f32 to vector<2x11x8xf32>
    %21 = arith.select %19, %1, %20 : vector<2x11x8xi1>, vector<2x11x8xf32>
    %cst_7 = arith.constant dense<0.000000e+00> : vector<2x8xf32>
    %22 = vector.multi_reduction <add>, %21, %cst_7 [1] : vector<2x11x8xf32> to vector<2x8xf32>
    %23 = arith.subf %13, %22 : vector<2x8xf32>
    %cst_8 = arith.constant 0.000000e+00 : f32
    %24 = vector.broadcast %cst_8 : f32 to vector<2x8xf32>
    %25 = arith.select %4, %23, %24 : vector<2x8xi1>, vector<2x8xf32>
    %cst_9 = arith.constant dense<0.000000e+00> : vector<2xf32>
    %26 = vector.multi_reduction <add>, %25, %cst_9 [1] : vector<2x8xf32> to vector<2xf32>
    %27 = vector.shape_cast %26 : vector<2xf32> to vector<2x1xf32>
    %28 = vector.shape_cast %27 : vector<2x1xf32> to vector<1x1x2x1xf32>
    %c0_10 = arith.constant 0 : index
    %c0_11 = arith.constant 0 : index
    %c0_12 = arith.constant 0 : index
    %c0_13 = arith.constant 0 : index
    %29 = vector.load %arg4[%c0_10, %c0_11, %c0_12, %c0_13] : memref<1x1x2x1xf32, #tpu.memory_space<vmem>>, vector<1x1x2x1xf32>
    tpu.vector_store %arg4[%c0_10, %c0_11, %c0_12, %c0_13], %28 {strides = array<i32>} : memref<1x1x2x1xf32, #tpu.memory_space<vmem>>, vector<1x1x2x1xf32>,
    return
  }
  func.func @transform_0(%arg0: i32, %arg1: i32) -> (i32, i32) {
    %c0_i32 = arith.constant 0 : i32
    %c0_i32_0 = arith.constant 0 : i32
    return %c0_i32, %arg1 : i32, i32
  }
  func.func @transform_1(%arg0: i32, %arg1: i32) -> (i32, i32, i32, i32) {
    %c0_i32 = arith.constant 0 : i32
    %c0_i32_0 = arith.constant 0 : i32
    %c0_i32_1 = arith.constant 0 : i32
    return %arg0, %c0_i32, %c0_i32_0, %arg1 : i32, i32, i32, i32
  }
  func.func @transform_2(%arg0: i32, %arg1: i32) -> (i32, i32, i32, i32) {
    %c0_i32 = arith.constant 0 : i32
    %c0_i32_0 = arith.constant 0 : i32
    %c0_i32_1 = arith.constant 0 : i32
    return %arg0, %arg1, %c0_i32, %c0_i32_0 : i32, i32, i32, i32
  }
}

</mosaic_0001>

<llo_original>
// kernel: tpu_custom_call.1
$region0: #{tpu_custom_call.1}
  #allocation0 [shape = 'u32[]', space=smem, size = 0x4, offset = 0x4, fixed_abs, tag = 'smem constant byte address 0x4 - core index']
  #allocation1 [shape = 'u32[144,128]{1,0:T(1,128)}', space=vmem, size = 0x12000, scoped, tag = 'internal scratch']
  %s0 = inlined_call_operand.hbm [shape: s32[2,8], index: 0, kind: input, shape index: {}]
  %s1 = inlined_call_operand.hbm [shape: f32[3,2,11,8], index: 1, kind: input, shape index: {}]
  %s2 = inlined_call_operand.hbm [shape: f32[3,1,2,1], index: 2, kind: output, shape index: {}]
  %s3 = sld [smem:[#allocation0]]
  $region49: #{tpu_custom_call.1} parent=0
    _
  %s5 = ssub.s32 1, %s3
  %s6 = scalar_select 0, %s5, %s3
  $region1: #{tpu_custom_call.1} parent=0
    #allocation2 [shape = 'u8[1024]{0}', space=vmem, size = 0x400, scoped, tag = 'input window, operand 0, single buffered']
    #allocation3 [shape = 's32[2]{0}', space=sflag, size = 0x8, scoped, tag = 'scoped memory for tpu_custom_call.1']
    #allocation4 [shape = 's32[2]{0}', space=sflag, size = 0x8, scoped, tag = 'scoped memory for tpu_custom_call.1']
    #allocation5 [shape = 'u8[32768]{0}', space=vmem, size = 0x8000, scoped, tag = 'input window, operand 1']
    #allocation6 [shape = 's32[2]{0}', space=sflag, size = 0x8, scoped, tag = 'scoped memory for tpu_custom_call.1']
    #allocation7 [shape = 'u8[2048]{0}', space=vmem, size = 0x800, scoped, tag = 'output window, operand 0']
    %7 = vsyncpa [#allocation3], 0
    %8 = vsyncpa [#allocation6], 0
    %s9 = scalar_lea.sflag [#allocation6], 1
    %10 = vsyncpa %s9, 0
    %11 = vsyncpa [#allocation4], 0
    %s12 = scalar_lea.sflag [#allocation4], 1
    %13 = vsyncpa %s12, 0
    loop: start=0, step=1, limit=5
    $region2: #{tpu_custom_call.1} parent=1 // loop_pre_header
      _
    $region3: #{tpu_custom_call.1} parent=1 // loop_header
      %s15 = sphi 0, %s19
      %p16 = scmp.ge.s32.totalorder %s15, 5
      %s22 = sphi 0, %s34
      %s23 = sphi 0, %s30
      %s24 = sphi 0, %s22
      %s25 = sphi 0, %s23
      %s26 = sphi 0, %s24
      %s27 = sphi 0, %s25
      %s37 = sphi 0, %s39
      %s40 = sphi 0, %s37
      %s41 = sphi 0, %s40
      %s57 = sphi 0, %s41
      %s65 = sphi 0, %s67
      %s68 = sphi 0, %s65
      %s69 = sphi 0, %s68
      %s85 = sphi 0, %s69
      %s93 = sphi 0, %s95
      %s96 = sphi 0, %s93
      %s97 = sphi 0, %s96
      %s113 = sphi 0, %s97
    $region4: #{tpu_custom_call.1} parent=1 // loop_header_branch
      %18 = sbr.rel (%p16) target = $region8
    $region5: #{tpu_custom_call.1} parent=1 // loop_body
      %s20 = ssub.s32 %s15, 1
      %s21 = ssub.s32 %s15, 2
      %s28 = sadd.s32 1, %s23
      %p29 = scmp.ge.s32.totalorder %s28, 1
      %s30 = scalar_select %p29, 0, %s28
      %s31 = sadd.s32 1, %s22
      %s32 = scalar_select %p29, %s31, %s22
      %p33 = scmp.ge.s32.totalorder %s32, 3
      %s34 = scalar_select %p33, 0, %s32
      %s35 = ssub.s32 %s23, %s30
      %p36 = scmp.eq.s32.totalorder %s35, 0
      %s38 = sadd.s32 %s37, 1
      %s39 = scalar_select %p36, %s37, %s38
      %p42 = pneg %p36
      %p43 = scmp.eq.s32.totalorder %s15, 2
      %p44 = por %p42, %p43
      %p45 = scmp.ne.s32.totalorder %s37, %s40
      %p46 = scmp.eq.s32.totalorder %s15, 0
      %p47 = por %p45, %p46
      %p48 = scmp.ne.s32.totalorder %s37, %s40
      %p49 = scmp.eq.s32.totalorder %s20, 2
      %p50 = por %p48, %p49
      %p51 = scmp.ne.s32.totalorder %s40, %s41
      %p52 = scmp.eq.s32.totalorder %s20, 0
      %p53 = por %p51, %p52
      %p54 = scmp.ne.s32.totalorder %s40, %s41
      %p55 = scmp.eq.s32.totalorder %s21, 2
      %p56 = por %p54, %p55
      %p58 = scmp.ne.s32.totalorder %s41, %s57
      %p59 = scmp.eq.s32.totalorder %s21, 0
      %p60 = por %p58, %p59
      %s61 = ssub.s32 %s22, %s34
      %s62 = ssub.s32 %s23, %s30
      %s63 = sor.u32 %s61, %s62
      %p64 = scmp.eq.s32.totalorder %s63, 0
      %s66 = sadd.s32 %s65, 1
      %s67 = scalar_select %p64, %s65, %s66
      %p70 = pneg %p64
      %p71 = scmp.eq.s32.totalorder %s15, 2
      %p72 = por %p70, %p71
      %p73 = scmp.ne.s32.totalorder %s65, %s68
      %p74 = scmp.eq.s32.totalorder %s15, 0
      %p75 = por %p73, %p74
      %p76 = scmp.ne.s32.totalorder %s65, %s68
      %p77 = scmp.eq.s32.totalorder %s20, 2
      %p78 = por %p76, %p77
      %p79 = scmp.ne.s32.totalorder %s68, %s69
      %p80 = scmp.eq.s32.totalorder %s20, 0
      %p81 = por %p79, %p80
      %p82 = scmp.ne.s32.totalorder %s68, %s69
      %p83 = scmp.eq.s32.totalorder %s21, 2
      %p84 = por %p82, %p83
      %p86 = scmp.ne.s32.totalorder %s69, %s85
      %p87 = scmp.eq.s32.totalorder %s21, 0
      %p88 = por %p86, %p87
      %s89 = ssub.s32 %s22, %s34
      %s90 = ssub.s32 %s23, %s30
      %s91 = sor.u32 %s89, %s90
      %p92 = scmp.eq.s32.totalorder %s91, 0
      %s94 = sadd.s32 %s93, 1
      %s95 = scalar_select %p92, %s93, %s94
      %p98 = pneg %p92
      %p99 = scmp.eq.s32.totalorder %s15, 2
      %p100 = por %p98, %p99
      %p101 = scmp.ne.s32.totalorder %s93, %s96
      %p102 = scmp.eq.s32.totalorder %s15, 0
      %p103 = por %p101, %p102
      %p104 = scmp.ne.s32.totalorder %s93, %s96
      %p105 = scmp.eq.s32.totalorder %s20, 2
      %p106 = por %p104, %p105
      %p107 = scmp.ne.s32.totalorder %s96, %s97
      %p108 = scmp.eq.s32.totalorder %s20, 0
      %p109 = por %p107, %p108
      %p110 = scmp.ne.s32.totalorder %s96, %s97
      %p111 = scmp.eq.s32.totalorder %s21, 2
      %p112 = por %p110, %p111
      %p114 = scmp.ne.s32.totalorder %s97, %s113
      %p115 = scmp.eq.s32.totalorder %s21, 0
      %p116 = por %p114, %p115
      %p117 = scmp.le.s32.totalorder 1, %s15
      %p118 = scmp.lt.s32.totalorder %s15, 4
      %p119 = pnand %p117, %p118
      %p120 = pneg %p119
      // Predicated region
      $region9: #{tpu_custom_call.1} parent=5 // pred_check
        _
      $region10: #{tpu_custom_call.1} parent=5 // pred_check_branch
        %122 = sbr.rel (%p119) target = $region12
      $region11: #{tpu_custom_call.1} parent=5 // pred_region
        %s123 = ssub.s32 %s15, 1
        // Predicated region
        $region13: #{tpu_custom_call.1} parent=11 // pred_check
          %p124 = pneg %p53
        $region14: #{tpu_custom_call.1} parent=11 // pred_check_branch
          %126 = sbr.rel (%p124) target = $region16
        $region15: #{tpu_custom_call.1} parent=11 // pred_region
          %s128 = ssub.s32 32, 32
          %129 = vsyncadd [#allocation3], %s128
          %s130 = smul.addr %s25, 32
          %s131 = scalar_lea.hbm %s0, %s130
          %s133 = sshll.u32 [#allocation2], 4
          %s134 = int_to_ptr.vmem [resolvable:$true] %s133
          %136 = dma.hbm_to_vmem [thread:$0]  %s131, 32, %s134, [#allocation3]
        $region16: #{tpu_custom_call.1} parent=11 // pred_fallthru
          _
      $region12: #{tpu_custom_call.1} parent=5 // pred_fallthru
        _
      %p137 = scmp.lt.s32.totalorder %s15, 3
      // Predicated region
      $region17: #{tpu_custom_call.1} parent=5 // pred_check
        %p138 = pneg %p137
      $region18: #{tpu_custom_call.1} parent=5 // pred_check_branch
        %140 = sbr.rel (%p138) target = $region20
      $region19: #{tpu_custom_call.1} parent=5 // pred_region
        // Predicated region
        $region21: #{tpu_custom_call.1} parent=19 // pred_check
          %p141 = pneg %p75
        $region22: #{tpu_custom_call.1} parent=19 // pred_check_branch
          %143 = sbr.rel (%p141) target = $region24
        $region23: #{tpu_custom_call.1} parent=19 // pred_region
          %s144 = sand.u32 %s65, 1
          %s145 = scalar_lea.sflag [#allocation6], %s144
          %s146 = sand.u32 %s65, 1
          %s147 = smul.addr %s146, 32
          %s148 = scalar_lea.vmem [#allocation5], %s147
          %s150 = ssub.s32 512, 512
          %151 = vsyncadd %s145, %s150
          %s152 = smul.addr %s22, 4
          %s153 = sadd.s32 %s23, %s152
          %s154 = smul.addr %s153, 128
          %s155 = scalar_lea.hbm %s1, %s154
          %s156 = sshll.u32 %s148, 4
          %s157 = int_to_ptr.vmem [resolvable:$true] %s156
          %162 = dma.hbm_to_vmem [thread:$0]  %s155, 512, %s157, %s145, 128, 128, 8
        $region24: #{tpu_custom_call.1} parent=19 // pred_fallthru
          _
      $region20: #{tpu_custom_call.1} parent=5 // pred_fallthru
        _
      %p163 = scmp.le.s32.totalorder 1, %s15
      %p164 = scmp.lt.s32.totalorder %s15, 4
      %p165 = pnand %p163, %p164
      %p166 = pneg %p165
      // Predicated region
      $region25: #{tpu_custom_call.1} parent=5 // pred_check
        _
      $region26: #{tpu_custom_call.1} parent=5 // pred_check_branch
        %168 = sbr.rel (%p165) target = $region28
      $region27: #{tpu_custom_call.1} parent=5 // pred_region
        %s169 = ssub.s32 %s15, 1
        // Predicated region
        $region29: #{tpu_custom_call.1} parent=27 // pred_check
          %p170 = pneg %p53
        $region30: #{tpu_custom_call.1} parent=27 // pred_check_branch
          %172 = sbr.rel (%p170) target = $region32
        $region31: #{tpu_custom_call.1} parent=27 // pred_region
          %173 = dma.done [#allocation3], 32
        $region32: #{tpu_custom_call.1} parent=27 // pred_fallthru
          _
        %s174 = sand.u32 %s68, 1
        %s175 = scalar_lea.sflag [#allocation6], %s174
        %s176 = sand.u32 %s68, 1
        %s177 = smul.addr %s176, 32
        %s178 = scalar_lea.vmem [#allocation5], %s177
        // Predicated region
        $region33: #{tpu_custom_call.1} parent=27 // pred_check
          %p179 = pneg %p81
        $region34: #{tpu_custom_call.1} parent=27 // pred_check_branch
          %181 = sbr.rel (%p179) target = $region36
        $region35: #{tpu_custom_call.1} parent=27 // pred_region
          %182 = dma.done %s175, 512
        $region36: #{tpu_custom_call.1} parent=27 // pred_fallthru
          _
        %p183 = pneg %p53
        %p184 = pneg %p50
        %s185 = sand.u32 %s68, 1
        %s186 = scalar_lea.sflag [#allocation6], %s185
        %s187 = sand.u32 %s68, 1
        %s188 = smul.addr %s187, 32
        %s189 = scalar_lea.vmem [#allocation5], %s188
        %p190 = pneg %p81
        %p191 = pneg %p78
        %p192 = pneg %p109
        %p193 = pneg %p106
        %s194 = sand.u32 %s96, 1
        %s195 = scalar_lea.sflag [#allocation4], %s194
        %s196 = sand.u32 %s96, 1
        %s197 = smul.addr %s196, 2
        %s198 = scalar_lea.vmem [#allocation7], %s197
        %v199 = vld [vmem:[%s178] sm:$0xff]
        %v200 = vld [vmem:[%s178 + $0x8] sm:$0x7]
        %v201 = vld [vmem:[%s178 + $0x10] sm:$0xff]
        %v202 = vld [vmem:[%s178 + $0x18] sm:$0x7]
        %v203 = vld [vmem:[#allocation2] sm:$0x3]
        %vm204 = vcmp.ne.s32.totalorder %v203, 4294967196
        %vm205 = vcmask 64512
        %v206 = vsel %vm205, %v199, -inf
        %vm207 = vcmask 59392
        %v208 = vsel %vm207, %v200, -inf
        %v209 = vmax.f32 %v206, %v208
        %v210 = vrot.slane %v209, 4
        %v211 = vmax.f32 %v209, %v210
        %v212 = vrot.slane %v211, 2
        %v213 = vmax.f32 %v211, %v212
        %v214 = vrot.slane %v213, 1
        %v215 = vmax.f32 %v213, %v214
        %v216 = vsel %vm205, %v201, -inf
        %v217 = vsel %vm207, %v202, -inf
        %v218 = vmax.f32 %v216, %v217
        %v219 = vrot.slane %v218, 4
        %v220 = vmax.f32 %v218, %v219
        %v221 = vrot.slane %v220, 2
        %v222 = vmax.f32 %v220, %v221
        %v223 = vrot.slane %v222, 1
        %v224 = vmax.f32 %v222, %v223
        %v225 = vsub.f32 %v199, %v215
        %v226 = vsub.f32 %v200, %v215
        %v227 = vsub.f32 %v201, %v224
        %v228 = vsub.f32 %v202, %v224
        %v229 = vmul.f32 %v225, 1.442695
        %v230 = vpow.pop %v229
        %v231 = vmul.f32 %v226, 1.442695
        %v232 = vpow.pop %v231
        %v233 = vmul.f32 %v227, 1.442695
        %v234 = vpow.pop %v233
        %v235 = vmul.f32 %v228, 1.442695
        %v236 = vpow.pop %v235
        %v237 = vsel %vm205, %v230, 0.0
        %v238 = vsel %vm207, %v232, 0.0
        %v239 = vadd.f32 %v237, %v238
        %v240 = vrot.slane %v239, 4
        %v241 = vadd.f32 %v239, %v240
        %v242 = vrot.slane %v241, 2
        %v243 = vadd.f32 %v241, %v242
        %v244 = vrot.slane %v243, 1
        %v245 = vadd.f32 %v243, %v244
        %v246 = vsel %vm205, %v234, 0.0
        %v247 = vsel %vm207, %v236, 0.0
        %v248 = vadd.f32 %v246, %v247
        %v249 = vrot.slane %v248, 4
        %v250 = vadd.f32 %v248, %v249
        %v251 = vrot.slane %v250, 2
        %v252 = vadd.f32 %v250, %v251
        %v253 = vrot.slane %v252, 1
        %v254 = vadd.f32 %v252, %v253
        %v255 = vlog2.pop %v245
        %v256 = vmul.f32 %v255, 0.6931472
        %v257 = vlog2.pop %v254
        %v258 = vmul.f32 %v257, 0.6931472
        %v259 = vadd.f32 %v215, %v256
        %v260 = vadd.f32 %v224, %v258
        %v261 = vsel %vm204, %v203, 11
        %v262 = vlaneseq
        %v263 = vshrl.u32 %v262, 7
        %v264 = vadd.s32 %v263, 8
        %v266 = vunpack.c.l.s4 1966171168
        %v267 = vunpack.c.0.s8 %v266
        %v268 = vlaneseq
        %v269 = vshrl.u32 %v268, 7
        %v270 = vsub.s32 %v267, %v269
        %v271 = vrot.slane %v261, %v270
        %v272 = vcombine.high %v271, %v271
        %v274 = vunpack.c.l.s4 1966171168
        %v275 = vunpack.c.0.s8 %v274
        %v276 = vlaneseq
        %v277 = vshrl.u32 %v276, 7
        %v278 = vsub.s32 %v275, %v277
        %v279 = vrot.slane %v271, %v278
        %v281 = vunpack.c.l.s4 1966171168
        %v282 = vunpack.c.0.s8 %v281
        %v283 = vlaneseq
        %v284 = vshrl.u32 %v283, 7
        %v285 = vsub.s32 %v282, %v284
        %v286 = vrot.slane %v272, %v285
        %v287 = vlaneseq
        %v288 = vshrl.u32 %v287, 7
        %v289 = vsub.s32 0, %v288
        %v290 = vrot.slane %v279, %v289
        %v291 = vlaneseq
        %v292 = vshrl.u32 %v291, 7
        %v293 = vsub.s32 0, %v292
        %v294 = vrot.slane %v286, %v293
        %vm295 = vcmp.eq.s32.totalorder %v263, %v290
        %vm296 = vcmp.eq.s32.totalorder %v264, %v290
        %vm297 = vcmp.eq.s32.totalorder %v263, %v294
        %vm298 = vcmp.eq.s32.totalorder %v264, %v294
        %v299 = vsel %vm295, %v199, 0.0
        %v300 = vsel %vm296, %v200, 0.0
        %v301 = vsel %vm297, %v201, 0.0
        %v302 = vsel %vm298, %v202, 0.0
        %v303 = vsel %vm205, %v299, 0.0
        %v304 = vsel %vm207, %v300, 0.0
        %v305 = vadd.f32 %v303, %v304
        %v306 = vrot.slane %v305, 4
        %v307 = vadd.f32 %v305, %v306
        %v308 = vrot.slane %v307, 2
        %v309 = vadd.f32 %v307, %v308
        %v310 = vrot.slane %v309, 1
        %v311 = vadd.f32 %v309, %v310
        %v312 = vsel %vm205, %v301, 0.0
        %v313 = vsel %vm207, %v302, 0.0
        %v314 = vadd.f32 %v312, %v313
        %v315 = vrot.slane %v314, 4
        %v316 = vadd.f32 %v314, %v315
        %v317 = vrot.slane %v316, 2
        %v318 = vadd.f32 %v316, %v317
        %v319 = vrot.slane %v318, 1
        %v320 = vadd.f32 %v318, %v319
        %v321 = vsub.f32 %v259, %v311
        %v322 = vsub.f32 %v260, %v320
        %vm325 = vcmask 1041409
        %v326 = vsel %vm325, %v322, %v321
        %v328 = vsel %vm204, %v326, 0.0
        %vm329 = vcmask 58368
        %v330 = vsel %vm329, %v328, 0.0
        %331 = vadd.xlane.f32.xlu0 %v330
        %v332 = vpop.xlane.xlu0 %331
        %vm333 = vcmask 1024
        %334 = vst.msk [vmem:[%s198] sm:$0x3] %vm333, %v332
        %s335 = sand.u32 %s96, 1
        %s336 = scalar_lea.sflag [#allocation4], %s335
        %s337 = sand.u32 %s96, 1
        %s338 = smul.addr %s337, 2
        %s339 = scalar_lea.vmem [#allocation7], %s338
        // Predicated region
        $region37: #{tpu_custom_call.1} parent=27 // pred_check
          %p340 = pneg %p106
        $region38: #{tpu_custom_call.1} parent=27 // pred_check_branch
          %342 = sbr.rel (%p340) target = $region40
        $region39: #{tpu_custom_call.1} parent=27 // pred_region
          %s344 = ssub.s32 32, 32
          %345 = vsyncadd %s336, %s344
          %s346 = sadd.s32 %s25, %s24
          %s347 = smul.addr %s346, 32
          %s348 = scalar_lea.hbm %s2, %s347
          %s350 = sshll.u32 %s339, 4
          %s351 = int_to_ptr.vmem [resolvable:$true] %s350
          %353 = dma.vmem_to_hbm [thread:$0]  %s351, 32, %s348, %s336
        $region40: #{tpu_custom_call.1} parent=27 // pred_fallthru
          _
      $region28: #{tpu_custom_call.1} parent=5 // pred_fallthru
        _
      %p354 = scmp.le.s32.totalorder 2, %s15
      // Predicated region
      $region41: #{tpu_custom_call.1} parent=5 // pred_check
        %p355 = pneg %p354
      $region42: #{tpu_custom_call.1} parent=5 // pred_check_branch
        %357 = sbr.rel (%p355) target = $region44
      $region43: #{tpu_custom_call.1} parent=5 // pred_region
        %s358 = ssub.s32 %s15, 2
        // Predicated region
        $region45: #{tpu_custom_call.1} parent=43 // pred_check
          %p359 = pneg %p112
        $region46: #{tpu_custom_call.1} parent=43 // pred_check_branch
          %361 = sbr.rel (%p359) target = $region48
        $region47: #{tpu_custom_call.1} parent=43 // pred_region
          %s362 = sand.u32 %s97, 1
          %s363 = scalar_lea.sflag [#allocation4], %s362
          %s364 = sand.u32 %s97, 1
          %s365 = smul.addr %s364, 2
          %s366 = scalar_lea.vmem [#allocation7], %s365
          %367 = dma.done %s363, 32
        $region48: #{tpu_custom_call.1} parent=43 // pred_fallthru
          _
      $region44: #{tpu_custom_call.1} parent=5 // pred_fallthru
        _
    $region6: #{tpu_custom_call.1} parent=1 // loop_footer
      %s19 = sadd.s32 1, %s15
    $region7: #{tpu_custom_call.1} parent=1 // loop_footer_branch
      %14 = sbr.rel target = $region3
    $region8: #{tpu_custom_call.1} parent=1 // loop_exit
      _
    %368 = vsyncpa [#allocation3], 1
    %s369 = scalar_lea.sflag [#allocation3], 1
    %370 = vsyncpa %s369, 1
    %371 = vsyncpa [#allocation6], 1
    %s372 = scalar_lea.sflag [#allocation6], 1
    %373 = vsyncpa %s372, 1
    %374 = vsyncpa [#allocation4], 1
    %s375 = scalar_lea.sflag [#allocation4], 1
    %376 = vsyncpa %s375, 1

</llo_original>
